<compile_context>
chip_gen: v7x
topology: tpu7x:2x2x1
jax: 0.10.0
libtpu: 0.0.40
codegen_flags: <defaults>
</compile_context>

<pallas_src>
import functools

import jax
import jax.numpy as jnp
from jax.experimental import pallas as pl
from jax.experimental.pallas import tpu as pltpu

LN_EPS = 1e-5  # torch.nn.LayerNorm default


def _round_up(x, m):
    return ((x + m - 1) // m) * m


def _choose_batch_tile(B, N, Fp, budget_bytes=8 << 20):
    """Largest divisor of B whose double-buffered working set fits the budget."""
    best = 1
    for bt in range(1, B + 1):
        if B % bt:
            continue
        per_step = bt * (2 * N * Fp + N * N) * 4  # x + out + adjacency, f32
        if 2 * per_step > budget_bytes:           # double buffering
            break
        best = bt
        if bt * N >= 256:                         # enough MXU rows per step
            break
    return best


def gcn_layer_kernel(x_ref, a_ref,
                     w2_ref, b2_ref,
                     w3_ref, b3_ref,
                     w4_ref, b4_ref,
                     g_ref, be_ref,
                     o_ref,
                     *, n_nodes, f_real, f_pad, bt):
    # Load params once (hoisted; no per-use re-indexing).
    w2 = w2_ref[...]
    w3 = w3_ref[...]
    w4 = w4_ref[...]
    b2 = b2_ref[...]
    b3 = b3_ref[...]
    b4 = b4_ref[...]
    gamma = g_ref[...]
    beta = be_ref[...]

    x3 = x_ref[...].astype(jnp.float32)   # (Bt, N, Fp), padded lanes are zero
    a3 = a_ref[...].astype(jnp.float32)   # (Bt, N, N)

    rows = bt * n_nodes
    x2 = x3.reshape(rows, f_pad)

    # msg = msg_linear2(input_)  — folded rows, lane-dense Fp, weights pre-T'd.
    h = jnp.dot(x2, w2, preferred_element_type=jnp.float32) + b2

    # msg = bmm(adjacent, msg)
    h3 = h.reshape(bt, n_nodes, f_pad)
    m3 = jnp.einsum('bij,bjf->bif', a3, h3, preferred_element_type=jnp.float32)
    m2 = m3.reshape(rows, f_pad)

    # msg = relu(msg_linear3(msg)); msg = msg_linear4(msg)
    m2 = jnp.maximum(jnp.dot(m2, w3, preferred_element_type=jnp.float32) + b3, 0.0)
    m2 = jnp.dot(m2, w4, preferred_element_type=jnp.float32) + b4
    # TODO(synk): Dropout omitted (identity in eval mode).

    # Residual + LayerNorm over the real F features (padded lanes of y are 0).
    y = x2 + m2
    inv_f = 1.0 / float(f_real)
    mean = jnp.sum(y, axis=-1, keepdims=True) * inv_f
    lane = jax.lax.broadcasted_iota(jnp.int32, y.shape, 1)
    feat_mask = (lane < f_real).astype(jnp.float32)
    d = (y - mean) * feat_mask
    var = jnp.sum(d * d, axis=-1, keepdims=True) * inv_f
    yn = d * jax.lax.rsqrt(var + LN_EPS)
    out = yn * gamma + beta   # padded gamma/beta are 0 -> padded lanes stay 0

    o_ref[...] = out.reshape(bt, n_nodes, f_pad).astype(o_ref.dtype)


def gcn_layer(x, adj, w2, b2, w3, b3, w4, b4, gamma, beta):
    """x: (B, N, F); adj: (B, N, N); weights PyTorch-layout (out, in)."""
    B, N, F = x.shape
    assert adj.shape == (B, N, N)

    Fp = _round_up(F, 128)                 # lane-dense last dim
    Bt = _choose_batch_tile(B, N, Fp)
    pad_f = Fp - F

    # Pad activations; pre-transpose + pad weights; pad 1-D params to (1, Fp).
    x_p = jnp.pad(x, ((0, 0), (0, 0), (0, pad_f)))

    def pad_wt(w):                         # (out,in) -> (in,out), zero-padded
        return jnp.pad(w.T, ((0, pad_f), (0, pad_f)))

    def pad_v(v):
        return jnp.pad(v, (0, pad_f)).reshape(1, Fp)

    w2t, w3t, w4t = pad_wt(w2), pad_wt(w3), pad_wt(w4)
    b2p, b3p, b4p = pad_v(b2), pad_v(b3), pad_v(b4)
    gp, bp = pad_v(gamma), pad_v(beta)     # padded lanes: gamma=0, beta=0

    x_spec = pl.BlockSpec((Bt, N, Fp), lambda b: (b, 0, 0))
    a_spec = pl.BlockSpec((Bt, N, N), lambda b: (b, 0, 0))
    w_spec = pl.BlockSpec((Fp, Fp), lambda b: (0, 0))   # resident, no re-DMA
    v_spec = pl.BlockSpec((1, Fp), lambda b: (0, 0))

    kernel = functools.partial(gcn_layer_kernel,
                               n_nodes=N, f_real=F, f_pad=Fp, bt=Bt)

    out_p = pl.pallas_call(
        kernel,
        out_shape=jax.ShapeDtypeStruct((B, N, Fp), x.dtype),
        grid_spec=pltpu.PrefetchScalarGridSpec(
            num_scalar_prefetch=0,
            grid=(B // Bt,),
            in_specs=[
                x_spec,            # input_
                a_spec,            # adjacent
                w_spec, v_spec,    # linear2
                w_spec, v_spec,    # linear3
                w_spec, v_spec,    # linear4
                v_spec, v_spec,    # layernorm gamma / beta
            ],
            out_specs=x_spec,
        ),
        compiler_params=pltpu.CompilerParams(
            dimension_semantics=("parallel",),
            vmem_limit_bytes=32 * 1024 * 1024),
    )(x_p, adj, w2t, b2p, w3t, b3p, w4t, b4p, gp, bp)

    return out_p[..., :F]


def _reference(x, adj, w2, b2, w3, b3, w4, b4, gamma, beta):
    msg = x @ w2.T + b2
    msg = jnp.einsum("bij,bjf->bif", adj, msg)
    msg = jnp.maximum(msg @ w3.T + b3, 0.0)
    msg = msg @ w4.T + b4
    y = x + msg
    mean = jnp.mean(y, axis=-1, keepdims=True)
    var = jnp.mean((y - mean) ** 2, axis=-1, keepdims=True)
    return (y - mean) / jnp.sqrt(var + LN_EPS) * gamma + beta


if __name__ == "__main__":
    B, N, F = 2, 8, 32

    key = jax.random.PRNGKey(0)
    ks = jax.random.split(key, 12)
    bound = 1.0 / jnp.sqrt(F)

    x = jax.random.normal(ks[0], (B, N, F), dtype=jnp.float32)
    adj = jax.random.uniform(ks[1], (B, N, N), dtype=jnp.float32)

    def lin_init(kw, kb):
        w = jax.random.uniform(kw, (F, F), minval=-bound, maxval=bound,
                               dtype=jnp.float32)
        b = jax.random.uniform(kb, (F,), minval=-bound, maxval=bound,
                               dtype=jnp.float32)
        return w, b

    w2, b2 = lin_init(ks[2], ks[3])
    w3, b3 = lin_init(ks[4], ks[5])
    w4, b4 = lin_init(ks[6], ks[7])
    gamma = jnp.ones((F,), dtype=jnp.float32)
    beta = jnp.zeros((F,), dtype=jnp.float32)

    out = gcn_layer(x, adj, w2, b2, w3, b3, w4, b4, gamma, beta)
    out = jax.block_until_ready(out)

    ref = _reference(x, adj, w2, b2, w3, b3, w4, b4, gamma, beta)
    assert out.shape == (B, N, F)
    assert jnp.allclose(out, ref, atol=1e-4, rtol=1e-4), "mismatch vs reference"

    print("KERNEL_OK")
</pallas_src>

<mosaic_0001>
module attributes {stable_mosaic.version = 11 : i64} {
  func.func @gcn_layer_kernel(%arg0: i32, %arg1: memref<2x8x128xf32, #tpu.memory_space<vmem>>, %arg2: memref<2x8x8xf32, #tpu.memory_space<vmem>>, %arg3: memref<128x128xf32, #tpu.memory_space<vmem>>, %arg4: memref<1x128xf32, #tpu.memory_space<vmem>>, %arg5: memref<128x128xf32, #tpu.memory_space<vmem>>, %arg6: memref<1x128xf32, #tpu.memory_space<vmem>>, %arg7: memref<128x128xf32, #tpu.memory_space<vmem>>, %arg8: memref<1x128xf32, #tpu.memory_space<vmem>>, %arg9: memref<1x128xf32, #tpu.memory_space<vmem>>, %arg10: memref<1x128xf32, #tpu.memory_space<vmem>>, %arg11: memref<2x8x128xf32, #tpu.memory_space<vmem>>) attributes {dimension_semantics = [#tpu.dimension_semantics<parallel>], iteration_bounds = array<i64: 1>, scalar_prefetch = 0 : i64, scratch_operands = 0 : i64, tpu.core_type = #tpu.core_type<tc>, window_params = [{transform_indices = @transform_0, window_bounds = array<i64: 2, 8, 128>}, {transform_indices = @transform_1, window_bounds = array<i64: 2, 8, 8>}, {pipeline_mode = #tpu.pipeline_mode<synchronous>, transform_indices = @transform_2, window_bounds = array<i64: 128, 128>}, {pipeline_mode = #tpu.pipeline_mode<synchronous>, transform_indices = @transform_3, window_bounds = array<i64: 1, 128>}, {pipeline_mode = #tpu.pipeline_mode<synchronous>, transform_indices = @transform_4, window_bounds = array<i64: 128, 128>}, {pipeline_mode = #tpu.pipeline_mode<synchronous>, transform_indices = @transform_5, window_bounds = array<i64: 1, 128>}, {pipeline_mode = #tpu.pipeline_mode<synchronous>, transform_indices = @transform_6, window_bounds = array<i64: 128, 128>}, {pipeline_mode = #tpu.pipeline_mode<synchronous>, transform_indices = @transform_7, window_bounds = array<i64: 1, 128>}, {pipeline_mode = #tpu.pipeline_mode<synchronous>, transform_indices = @transform_8, window_bounds = array<i64: 1, 128>}, {pipeline_mode = #tpu.pipeline_mode<synchronous>, transform_indices = @transform_9, window_bounds = array<i64: 1, 128>}, {transform_indices = @transform_10, window_bounds = array<i64: 2, 8, 128>}]} {
    %c0 = arith.constant 0 : index
    %c0_0 = arith.constant 0 : index
    %0 = vector.load %arg3[%c0, %c0_0] : memref<128x128xf32, #tpu.memory_space<vmem>>, vector<128x128xf32>
    %c0_1 = arith.constant 0 : index
    %c0_2 = arith.constant 0 : index
    %1 = vector.load %arg5[%c0_1, %c0_2] : memref<128x128xf32, #tpu.memory_space<vmem>>, vector<128x128xf32>
    %c0_3 = arith.constant 0 : index
    %c0_4 = arith.constant 0 : index
    %2 = vector.load %arg7[%c0_3, %c0_4] : memref<128x128xf32, #tpu.memory_space<vmem>>, vector<128x128xf32>
    %c0_5 = arith.constant 0 : index
    %c0_6 = arith.constant 0 : index
    %3 = vector.load %arg4[%c0_5, %c0_6] : memref<1x128xf32, #tpu.memory_space<vmem>>, vector<1x128xf32>
    %c0_7 = arith.constant 0 : index
    %c0_8 = arith.constant 0 : index
    %4 = vector.load %arg6[%c0_7, %c0_8] : memref<1x128xf32, #tpu.memory_space<vmem>>, vector<1x128xf32>
    %c0_9 = arith.constant 0 : index
    %c0_10 = arith.constant 0 : index
    %5 = vector.load %arg8[%c0_9, %c0_10] : memref<1x128xf32, #tpu.memory_space<vmem>>, vector<1x128xf32>
    %c0_11 = arith.constant 0 : index
    %c0_12 = arith.constant 0 : index
    %6 = vector.load %arg9[%c0_11, %c0_12] : memref<1x128xf32, #tpu.memory_space<vmem>>, vector<1x128xf32>
    %c0_13 = arith.constant 0 : index
    %c0_14 = arith.constant 0 : index
    %7 = vector.load %arg10[%c0_13, %c0_14] : memref<1x128xf32, #tpu.memory_space<vmem>>, vector<1x128xf32>
    %c0_15 = arith.constant 0 : index
    %c0_16 = arith.constant 0 : index
    %c0_17 = arith.constant 0 : index
    %8 = vector.load %arg1[%c0_15, %c0_16, %c0_17] : memref<2x8x128xf32, #tpu.memory_space<vmem>>, vector<2x8x128xf32>
    %c0_18 = arith.constant 0 : index
    %c0_19 = arith.constant 0 : index
    %c0_20 = arith.constant 0 : index
    %9 = vector.load %arg2[%c0_18, %c0_19, %c0_20] : memref<2x8x8xf32, #tpu.memory_space<vmem>>, vector<2x8x8xf32>
    %10 = vector.shape_cast %8 : vector<2x8x128xf32> to vector<16x128xf32>
    %cst = arith.constant dense<0.000000e+00> : vector<16x128xf32>
    %11 = tpu.matmul %10, %0, %cst {dimension_numbers = #tpu.dot_dimension_numbers<[1], [0], [0], [1], [0, 0, 1, 1], [], []>} : vector<16x128xf32>, vector<128x128xf32>, vector<16x128xf32> -> vector<16x128xf32>
    %12 = vector.broadcast %3 : vector<1x128xf32> to vector<16x128xf32>
    %13 = arith.addf %11, %12 : vector<16x128xf32>
    %14 = vector.shape_cast %13 : vector<16x128xf32> to vector<2x8x128xf32>
    "tpu.trace_start"() <{level = 10 : i32, message = "bij,bjf->bif"}> : () -> ()
    %cst_21 = arith.constant dense<0.000000e+00> : vector<2x8x128xf32>
    %15 = tpu.matmul %9, %14, %cst_21 {dimension_numbers = #tpu.dot_dimension_numbers<[2], [1], [1], [2], [0, 0, 0, 1, 1, 2], [0], [0]>} : vector<2x8x8xf32>, vector<2x8x128xf32>, vector<2x8x128xf32> -> vector<2x8x128xf32>
    "tpu.trace_stop"() : () -> ()
    %16 = vector.shape_cast %15 : vector<2x8x128xf32> to vector<16x128xf32>
    %cst_22 = arith.constant dense<0.000000e+00> : vector<16x128xf32>
    %17 = tpu.matmul %16, %1, %cst_22 {dimension_numbers = #tpu.dot_dimension_numbers<[1], [0], [0], [1], [0, 0, 1, 1], [], []>} : vector<16x128xf32>, vector<128x128xf32>, vector<16x128xf32> -> vector<16x128xf32>
    %18 = vector.broadcast %4 : vector<1x128xf32> to vector<16x128xf32>
    %19 = arith.addf %17, %18 : vector<16x128xf32>
    %cst_23 = arith.constant 0.000000e+00 : f32
    %20 = vector.broadcast %cst_23 : f32 to vector<16x128xf32>
    %21 = arith.maximumf %19, %20 : vector<16x128xf32>
    %cst_24 = arith.constant dense<0.000000e+00> : vector<16x128xf32>
    %22 = tpu.matmul %21, %2, %cst_24 {dimension_numbers = #tpu.dot_dimension_numbers<[1], [0], [0], [1], [0, 0, 1, 1], [], []>} : vector<16x128xf32>, vector<128x128xf32>, vector<16x128xf32> -> vector<16x128xf32>
    %23 = vector.broadcast %5 : vector<1x128xf32> to vector<16x128xf32>
    %24 = arith.addf %22, %23 : vector<16x128xf32>
    %25 = arith.addf %10, %24 : vector<16x128xf32>
    %cst_25 = arith.constant dense<0.000000e+00> : vector<16xf32>
    %26 = vector.multi_reduction <add>, %25, %cst_25 [1] : vector<16x128xf32> to vector<16xf32>
    %27 = vector.shape_cast %26 : vector<16xf32> to vector<16x1xf32>
    %cst_26 = arith.constant 3.125000e-02 : f32
    %28 = vector.broadcast %cst_26 : f32 to vector<16x1xf32>
    %29 = arith.mulf %27, %28 : vector<16x1xf32>
    %30 = tpu.iota {dimensions = array<i32: 1>} : vector<16x128xi32>
    %c32_i32 = arith.constant 32 : i32
    %31 = vector.broadcast %c32_i32 : i32 to vector<16x128xi32>
    %32 = arith.cmpi slt, %30, %31 : vector<16x128xi32>
    %33 = arith.extui %32 : vector<16x128xi1> to vector<16x128xi32>
    %34 = arith.sitofp %33 : vector<16x128xi32> to vector<16x128xf32>
    %35 = vector.broadcast %29 : vector<16x1xf32> to vector<16x128xf32>
    %36 = arith.subf %25, %35 : vector<16x128xf32>
    %37 = arith.mulf %36, %34 : vector<16x128xf32>
    %38 = arith.mulf %37, %37 : vector<16x128xf32>
    %cst_27 = arith.constant dense<0.000000e+00> : vector<16xf32>
    %39 = vector.multi_reduction <add>, %38, %cst_27 [1] : vector<16x128xf32> to vector<16xf32>
    %40 = vector.shape_cast %39 : vector<16xf32> to vector<16x1xf32>
    %cst_28 = arith.constant 3.125000e-02 : f32
    %41 = vector.broadcast %cst_28 : f32 to vector<16x1xf32>
    %42 = arith.mulf %40, %41 : vector<16x1xf32>
    %cst_29 = arith.constant 9.99999974E-6 : f32
    %43 = vector.broadcast %cst_29 : f32 to vector<16x1xf32>
    %44 = arith.addf %42, %43 : vector<16x1xf32>
    %45 = math.rsqrt %44 : vector<16x1xf32>
    %46 = vector.broadcast %45 : vector<16x1xf32> to vector<16x128xf32>
    %47 = arith.mulf %37, %46 : vector<16x128xf32>
    %48 = vector.broadcast %6 : vector<1x128xf32> to vector<16x128xf32>
    %49 = arith.mulf %47, %48 : vector<16x128xf32>
    %50 = vector.broadcast %7 : vector<1x128xf32> to vector<16x128xf32>
    %51 = arith.addf %49, %50 : vector<16x128xf32>
    %52 = vector.shape_cast %51 : vector<16x128xf32> to vector<2x8x128xf32>
    %c0_30 = arith.constant 0 : index
    %c0_31 = arith.constant 0 : index
    %c0_32 = arith.constant 0 : index
    %53 = vector.load %arg11[%c0_30, %c0_31, %c0_32] : memref<2x8x128xf32, #tpu.memory_space<vmem>>, vector<2x8x128xf32>
    tpu.vector_store %arg11[%c0_30, %c0_31, %c0_32], %52 {strides = array<i32>} : memref<2x8x128xf32, #tpu.memory_space<vmem>>, vector<2x8x128xf32>,
    return
  }
  func.func @transform_0(%arg0: i32) -> (i32, i32, i32) {
    %c0_i32 = arith.constant 0 : i32
    %c0_i32_0 = arith.constant 0 : i32
    %c0_i32_1 = arith.constant 0 : i32
    return %arg0, %c0_i32, %c0_i32_0 : i32, i32, i32
  }
  func.func @transform_1(%arg0: i32) -> (i32, i32, i32) {
    %c0_i32 = arith.constant 0 : i32
    %c0_i32_0 = arith.constant 0 : i32
    %c0_i32_1 = arith.constant 0 : i32
    return %arg0, %c0_i32, %c0_i32_0 : i32, i32, i32
  }
  func.func @transform_2(%arg0: i32) -> (i32, i32) {
    %c0_i32 = arith.constant 0 : i32
    %c0_i32_0 = arith.constant 0 : i32
    %c0_i32_1 = arith.constant 0 : i32
    return %c0_i32, %c0_i32_0 : i32, i32
  }
  func.func @transform_3(%arg0: i32) -> (i32, i32) {
    %c0_i32 = arith.constant 0 : i32
    %c0_i32_0 = arith.constant 0 : i32
    %c0_i32_1 = arith.constant 0 : i32
    return %c0_i32, %c0_i32_0 : i32, i32
  }
  func.func @transform_4(%arg0: i32) -> (i32, i32) {
    %c0_i32 = arith.constant 0 : i32
    %c0_i32_0 = arith.constant 0 : i32
    %c0_i32_1 = arith.constant 0 : i32
    return %c0_i32, %c0_i32_0 : i32, i32
  }
  func.func @transform_5(%arg0: i32) -> (i32, i32) {
    %c0_i32 = arith.constant 0 : i32
    %c0_i32_0 = arith.constant 0 : i32
    %c0_i32_1 = arith.constant 0 : i32
    return %c0_i32, %c0_i32_0 : i32, i32
  }
  func.func @transform_6(%arg0: i32) -> (i32, i32) {
    %c0_i32 = arith.constant 0 : i32
    %c0_i32_0 = arith.constant 0 : i32
    %c0_i32_1 = arith.constant 0 : i32
    return %c0_i32, %c0_i32_0 : i32, i32
  }
  func.func @transform_7(%arg0: i32) -> (i32, i32) {
    %c0_i32 = arith.constant 0 : i32
    %c0_i32_0 = arith.constant 0 : i32
    %c0_i32_1 = arith.constant 0 : i32
    return %c0_i32, %c0_i32_0 : i32, i32
  }
  func.func @transform_8(%arg0: i32) -> (i32, i32) {
    %c0_i32 = arith.constant 0 : i32
    %c0_i32_0 = arith.constant 0 : i32
    %c0_i32_1 = arith.constant 0 : i32
    return %c0_i32, %c0_i32_0 : i32, i32
  }
  func.func @transform_9(%arg0: i32) -> (i32, i32) {
    %c0_i32 = arith.constant 0 : i32
    %c0_i32_0 = arith.constant 0 : i32
    %c0_i32_1 = arith.constant 0 : i32
    return %c0_i32, %c0_i32_0 : i32, i32
  }
  func.func @transform_10(%arg0: i32) -> (i32, i32, i32) {
    %c0_i32 = arith.constant 0 : i32
    %c0_i32_0 = arith.constant 0 : i32
    %c0_i32_1 = arith.constant 0 : i32
    return %arg0, %c0_i32, %c0_i32_0 : i32, i32, i32
  }
}

</mosaic_0001>

<llo_original>
// kernel: tpu_custom_call.1
$region0: #{tpu_custom_call.1}
  #allocation0 [shape = 'u32[]', space=smem, size = 0x4, offset = 0x4, fixed_abs, tag = 'smem constant byte address 0x4 - core index']
  #allocation1 [shape = 'u32[144,128]{1,0:T(1,128)}', space=vmem, size = 0x12000, scoped, tag = 'internal scratch']
  %s0 = inlined_call_operand.hbm [shape: f32[2,8,128], index: 0, kind: input, shape index: {}]
  %s1 = inlined_call_operand.hbm [shape: f32[2,8,8], index: 1, kind: input, shape index: {}]
  %s2 = inlined_call_operand.hbm [shape: f32[128,128], index: 2, kind: input, shape index: {}]
  %s3 = inlined_call_operand.vmem [shape: f32[1,128], index: 3, kind: input, shape index: {}]
  %s4 = inlined_call_operand.hbm [shape: f32[128,128], index: 4, kind: input, shape index: {}]
  %s5 = inlined_call_operand.vmem [shape: f32[1,128], index: 5, kind: input, shape index: {}]
  %s6 = inlined_call_operand.hbm [shape: f32[128,128], index: 6, kind: input, shape index: {}]
  %s7 = inlined_call_operand.vmem [shape: f32[1,128], index: 7, kind: input, shape index: {}]
  %s8 = inlined_call_operand.vmem [shape: f32[1,128], index: 8, kind: input, shape index: {}]
  %s9 = inlined_call_operand.vmem [shape: f32[1,128], index: 9, kind: input, shape index: {}]
  %s10 = inlined_call_operand.hbm [shape: f32[2,8,128], index: 10, kind: output, shape index: {}]
  %s11 = sld [smem:[#allocation0]]
  $region70: #{tpu_custom_call.1} parent=0
    _
  %s13 = ssub.s32 1, %s11
  %s14 = scalar_select 0, %s13, %s11
  $region1: #{tpu_custom_call.1} parent=0
    #allocation2 [shape = 'u8[8192]{0}', space=vmem, size = 0x2000, scoped, tag = 'input window, operand 0, single buffered']
    #allocation3 [shape = 's32[1]{0}', space=sflag, size = 0x4, scoped, tag = 'scoped memory for tpu_custom_call.1']
    #allocation4 [shape = 's32[1]{0}', space=sflag, size = 0x4, scoped, tag = 'scoped memory for tpu_custom_call.1']
    #allocation5 [shape = 'u8[8192]{0}', space=vmem, size = 0x2000, scoped, tag = 'input window, operand 1, single buffered']
    #allocation6 [shape = 's32[1]{0}', space=sflag, size = 0x4, scoped, tag = 'scoped memory for tpu_custom_call.1']
    #allocation7 [shape = 'u8[65536]{0}', space=vmem, size = 0x10000, scoped, tag = 'input window, operand 2, single buffered']
    #allocation8 [shape = 'u8[65536]{0}', space=vmem, size = 0x10000, scoped, tag = 'input window, operand 4, single buffered']
    #allocation9 [shape = 's32[1]{0}', space=sflag, size = 0x4, scoped, tag = 'scoped memory for tpu_custom_call.1']
    #allocation10 [shape = 'u8[65536]{0}', space=vmem, size = 0x10000, scoped, tag = 'input window, operand 6, single buffered']
    #allocation11 [shape = 'u8[8192]{0}', space=vmem, size = 0x2000, scoped, tag = 'output window, operand 0, single buffered']
    %15 = vsyncpa [#allocation3], 0
    %16 = vsyncpa [#allocation6], 0
    %17 = vsyncpa [#allocation9], 0
    %18 = vsyncpa [#allocation4], 0
    // Predicated region
    $region2: #{tpu_custom_call.1} parent=1 // pred_check
      _
    $region3: #{tpu_custom_call.1} parent=1 // pred_check_branch
      %20 = sbr.rel (0) target = $region5
    $region4: #{tpu_custom_call.1} parent=1 // pred_region
      %s22 = ssub.s32 256, 256
      %23 = vsyncadd [#allocation3], %s22
      %s24 = sshll.u32 [#allocation2], 4
      %s25 = int_to_ptr.vmem [resolvable:$true] %s24
      %30 = dma.hbm_to_vmem [thread:$0]  %s0, 256, %s25, [#allocation3], 128, 128, 8
    $region5: #{tpu_custom_call.1} parent=1 // pred_fallthru
      _
    // Predicated region
    $region6: #{tpu_custom_call.1} parent=1 // pred_check
      _
    $region7: #{tpu_custom_call.1} parent=1 // pred_check_branch
      %32 = sbr.rel (0) target = $region9
    $region8: #{tpu_custom_call.1} parent=1 // pred_region
      %s34 = ssub.s32 256, 256
      %35 = vsyncadd [#allocation6], %s34
      %s36 = sshll.u32 [#allocation5], 4
      %s37 = int_to_ptr.vmem [resolvable:$true] %s36
      %42 = dma.hbm_to_vmem [thread:$0]  %s1, 256, %s37, [#allocation6], 128, 128, 8
    $region9: #{tpu_custom_call.1} parent=1 // pred_fallthru
      _
    // Predicated region
    $region10: #{tpu_custom_call.1} parent=1 // pred_check
      _
    $region11: #{tpu_custom_call.1} parent=1 // pred_check_branch
      %44 = sbr.rel (0) target = $region13
    $region12: #{tpu_custom_call.1} parent=1 // pred_region
      %s46 = ssub.s32 2048, 2048
      %47 = vsyncadd [#allocation6], %s46
      %s48 = sshll.u32 [#allocation7], 4
      %s49 = int_to_ptr.vmem [resolvable:$true] %s48
      %54 = dma.hbm_to_vmem [thread:$0]  %s2, 2048, %s49, [#allocation6], 128, 128, 8
    $region13: #{tpu_custom_call.1} parent=1 // pred_fallthru
      _
    // Predicated region
    $region14: #{tpu_custom_call.1} parent=1 // pred_check
      _
    $region15: #{tpu_custom_call.1} parent=1 // pred_check_branch
      %56 = sbr.rel (0) target = $region17
    $region16: #{tpu_custom_call.1} parent=1 // pred_region
      _
    $region17: #{tpu_custom_call.1} parent=1 // pred_fallthru
      _
    // Predicated region
    $region18: #{tpu_custom_call.1} parent=1 // pred_check
      _
    $region19: #{tpu_custom_call.1} parent=1 // pred_check_branch
      %58 = sbr.rel (0) target = $region21
    $region20: #{tpu_custom_call.1} parent=1 // pred_region
      %s60 = ssub.s32 2048, 2048
      %61 = vsyncadd [#allocation9], %s60
      %s62 = sshll.u32 [#allocation8], 4
      %s63 = int_to_ptr.vmem [resolvable:$true] %s62
      %68 = dma.hbm_to_vmem [thread:$0]  %s4, 2048, %s63, [#allocation9], 128, 128, 8
    $region21: #{tpu_custom_call.1} parent=1 // pred_fallthru
      _
    // Predicated region
    $region22: #{tpu_custom_call.1} parent=1 // pred_check
      _
    $region23: #{tpu_custom_call.1} parent=1 // pred_check_branch
      %70 = sbr.rel (0) target = $region25
    $region24: #{tpu_custom_call.1} parent=1 // pred_region
      _
    $region25: #{tpu_custom_call.1} parent=1 // pred_fallthru
      _
    // Predicated region
    $region26: #{tpu_custom_call.1} parent=1 // pred_check
      _
    $region27: #{tpu_custom_call.1} parent=1 // pred_check_branch
      %72 = sbr.rel (0) target = $region29
    $region28: #{tpu_custom_call.1} parent=1 // pred_region
      %s74 = ssub.s32 2048, 2048
      %75 = vsyncadd [#allocation9], %s74
      %s76 = sshll.u32 [#allocation10], 4
      %s77 = int_to_ptr.vmem [resolvable:$true] %s76
      %82 = dma.hbm_to_vmem [thread:$0]  %s6, 2048, %s77, [#allocation9], 128, 128, 8
    $region29: #{tpu_custom_call.1} parent=1 // pred_fallthru
      _
    // Predicated region
    $region30: #{tpu_custom_call.1} parent=1 // pred_check
      _
    $region31: #{tpu_custom_call.1} parent=1 // pred_check_branch
      %84 = sbr.rel (0) target = $region33
    $region32: #{tpu_custom_call.1} parent=1 // pred_region
      _
    $region33: #{tpu_custom_call.1} parent=1 // pred_fallthru
      _
    // Predicated region
    $region34: #{tpu_custom_call.1} parent=1 // pred_check
      _
    $region35: #{tpu_custom_call.1} parent=1 // pred_check_branch
      %86 = sbr.rel (0) target = $region37
    $region36: #{tpu_custom_call.1} parent=1 // pred_region
      _
    $region37: #{tpu_custom_call.1} parent=1 // pred_fallthru
      _
    // Predicated region
    $region38: #{tpu_custom_call.1} parent=1 // pred_check
      _
    $region39: #{tpu_custom_call.1} parent=1 // pred_check_branch
      %88 = sbr.rel (0) target = $region41
    $region40: #{tpu_custom_call.1} parent=1 // pred_region
      _
    $region41: #{tpu_custom_call.1} parent=1 // pred_fallthru
      _
    // Predicated region
    $region42: #{tpu_custom_call.1} parent=1 // pred_check
      _
    $region43: #{tpu_custom_call.1} parent=1 // pred_check_branch
      %90 = sbr.rel (0) target = $region45
    $region44: #{tpu_custom_call.1} parent=1 // pred_region
      %91 = dma.done [#allocation3], 256
    $region45: #{tpu_custom_call.1} parent=1 // pred_fallthru
      _
    // Predicated region
    $region46: #{tpu_custom_call.1} parent=1 // pred_check
      _
    $region47: #{tpu_custom_call.1} parent=1 // pred_check_branch
      %93 = sbr.rel (0) target = $region49
    $region48: #{tpu_custom_call.1} parent=1 // pred_region
      %94 = dma.done [#allocation6], 256
    $region49: #{tpu_custom_call.1} parent=1 // pred_fallthru
      _
    // Predicated region
    $region50: #{tpu_custom_call.1} parent=1 // pred_check
      _
    $region51: #{tpu_custom_call.1} parent=1 // pred_check_branch
      %96 = sbr.rel (0) target = $region53
    $region52: #{tpu_custom_call.1} parent=1 // pred_region
      %97 = dma.done [#allocation6], 2048
    $region53: #{tpu_custom_call.1} parent=1 // pred_fallthru
      _
    // Predicated region
    $region54: #{tpu_custom_call.1} parent=1 // pred_check
      _
    $region55: #{tpu_custom_call.1} parent=1 // pred_check_branch
      %99 = sbr.rel (0) target = $region57
    $region56: #{tpu_custom_call.1} parent=1 // pred_region
      %100 = dma.done [#allocation9], 2048
    $region57: #{tpu_custom_call.1} parent=1 // pred_fallthru
      _
    // Predicated region
    $region58: #{tpu_custom_call.1} parent=1 // pred_check
      _
    $region59: #{tpu_custom_call.1} parent=1 // pred_check_branch
      %102 = sbr.rel (0) target = $region61
    $region60: #{tpu_custom_call.1} parent=1 // pred_region
      %103 = dma.done [#allocation9], 2048
    $region61: #{tpu_custom_call.1} parent=1 // pred_fallthru
      _
    %v104 = vld [vmem:[#allocation7] sm:$0xff]
    %v105 = vld [vmem:[#allocation7 + $0x8] sm:$0xff]
    %v106 = vld [vmem:[#allocation7 + $0x10] sm:$0xff]
    %v107 = vld [vmem:[#allocation7 + $0x18] sm:$0xff]
    %v108 = vld [vmem:[#allocation7 + $0x20] sm:$0xff]
    %v109 = vld [vmem:[#allocation7 + $0x28] sm:$0xff]
    %v110 = vld [vmem:[#allocation7 + $0x30] sm:$0xff]
    %v111 = vld [vmem:[#allocation7 + $0x38] sm:$0xff]
    %v112 = vld [vmem:[#allocation7 + $0x40] sm:$0xff]
    %v113 = vld [vmem:[#allocation7 + $0x48] sm:$0xff]
    %v114 = vld [vmem:[#allocation7 + $0x50] sm:$0xff]
    %v115 = vld [vmem:[#allocation7 + $0x58] sm:$0xff]
    %v116 = vld [vmem:[#allocation7 + $0x60] sm:$0xff]
    %v117 = vld [vmem:[#allocation7 + $0x68] sm:$0xff]
    %v118 = vld [vmem:[#allocation7 + $0x70] sm:$0xff]
    %v119 = vld [vmem:[#allocation7 + $0x78] sm:$0xff]
    %v120 = vld [vmem:[#allocation8] sm:$0xff]
    %v121 = vld [vmem:[#allocation8 + $0x8] sm:$0xff]
    %v122 = vld [vmem:[#allocation8 + $0x10] sm:$0xff]
    %v123 = vld [vmem:[#allocation8 + $0x18] sm:$0xff]
    %v124 = vld [vmem:[#allocation8 + $0x20] sm:$0xff]
    %v125 = vld [vmem:[#allocation8 + $0x28] sm:$0xff]
    %v126 = vld [vmem:[#allocation8 + $0x30] sm:$0xff]
    %v127 = vld [vmem:[#allocation8 + $0x38] sm:$0xff]
    %v128 = vld [vmem:[#allocation8 + $0x40] sm:$0xff]
    %v129 = vld [vmem:[#allocation8 + $0x48] sm:$0xff]
    %v130 = vld [vmem:[#allocation8 + $0x50] sm:$0xff]
    %v131 = vld [vmem:[#allocation8 + $0x58] sm:$0xff]
    %v132 = vld [vmem:[#allocation8 + $0x60] sm:$0xff]
    %v133 = vld [vmem:[#allocation8 + $0x68] sm:$0xff]
    %v134 = vld [vmem:[#allocation8 + $0x70] sm:$0xff]
    %v135 = vld [vmem:[#allocation8 + $0x78] sm:$0xff]
    %v136 = vld [vmem:[#allocation10] sm:$0xff]
    %v137 = vld [vmem:[#allocation10 + $0x8] sm:$0xff]
    %v138 = vld [vmem:[#allocation10 + $0x10] sm:$0xff]
    %v139 = vld [vmem:[#allocation10 + $0x18] sm:$0xff]
    %v140 = vld [vmem:[#allocation10 + $0x20] sm:$0xff]
    %v141 = vld [vmem:[#allocation10 + $0x28] sm:$0xff]
    %v142 = vld [vmem:[#allocation10 + $0x30] sm:$0xff]
    %v143 = vld [vmem:[#allocation10 + $0x38] sm:$0xff]
    %v144 = vld [vmem:[#allocation10 + $0x40] sm:$0xff]
    %v145 = vld [vmem:[#allocation10 + $0x48] sm:$0xff]
    %v146 = vld [vmem:[#allocation10 + $0x50] sm:$0xff]
    %v147 = vld [vmem:[#allocation10 + $0x58] sm:$0xff]
    %v148 = vld [vmem:[#allocation10 + $0x60] sm:$0xff]
    %v149 = vld [vmem:[#allocation10 + $0x68] sm:$0xff]
    %v150 = vld [vmem:[#allocation10 + $0x70] sm:$0xff]
    %v151 = vld [vmem:[#allocation10 + $0x78] sm:$0xff]
    %v152 = vld [vmem:[%s3] sm:$0x1]
    %v153 = vld [vmem:[%s5] sm:$0x1]
    %v154 = vld [vmem:[%s7] sm:$0x1]
    %v155 = vld [vmem:[%s8] sm:$0x1]
    %v156 = vld [vmem:[%s9] sm:$0x1]
    %v157 = vld [vmem:[#allocation2] sm:$0xff]
    %v158 = vld [vmem:[#allocation2 + $0x8] sm:$0xff]
    %v159 = vld [vmem:[#allocation5] sm:$0xff]
    %v160 = vld [vmem:[#allocation5 + $0x8] sm:$0xff]
    %v162 = vlaneseq
    %v163 = vshrl.u32 %v162, 7
    %v164 = vsub.s32 0, %v163
    %v165 = vrot.slane %v152, %v164
    %167 = vmatprep.subr.mxu0 0.0
    %168 = vmatpush1.msra.mxu0 %v104
    %169 = vmatprep.subr.mxu0 0.0
    %170 = vmatpush1.msra.mxu0 %v105
    %171 = vmatprep.subr.mxu0 0.0
    %172 = vmatpush1.msra.mxu0 %v106
    %173 = vmatprep.subr.mxu0 0.0
    %174 = vmatpush1.msra.mxu0 %v107
    %175 = vmatprep.subr.mxu0 0.0
    %176 = vmatpush1.msra.mxu0 %v108
    %177 = vmatprep.subr.mxu0 0.0
    %178 = vmatpush1.msra.mxu0 %v109
    %179 = vmatprep.subr.mxu0 0.0
    %180 = vmatpush1.msra.mxu0 %v110
    %181 = vmatprep.subr.mxu0 0.0
    %182 = vmatpush1.msra.mxu0 %v111
    %183 = vmatprep.subr.mxu0 0.0
    %184 = vmatpush1.msra.mxu0 %v112
    %185 = vmatprep.subr.mxu0 0.0
    %186 = vmatpush1.msra.mxu0 %v113
    %187 = vmatprep.subr.mxu0 0.0
    %188 = vmatpush1.msra.mxu0 %v114
    %189 = vmatprep.subr.mxu0 0.0
    %190 = vmatpush1.msra.mxu0 %v115
    %191 = vmatprep.subr.mxu0 0.0
    %192 = vmatpush1.msra.mxu0 %v116
    %193 = vmatprep.subr.mxu0 0.0
    %194 = vmatpush1.msra.mxu0 %v117
    %195 = vmatprep.subr.mxu0 0.0
    %196 = vmatpush1.msra.mxu0 %v118
    %197 = vmatprep.subr.mxu0 0.0
    %198 = vmatpush1.msra.mxu0 %v119
    %199 = vmatprep.subr.mxu0 0.0
    %200 = vmatpush1.msra.mxu0 0.0
    %201 = vmatprep.subr.mxu0 0.0
    %202 = vmatpush1.msra.mxu0 0.0
    %203 = vmatprep.subr.mxu0 0.0
    %204 = vmatpush1.msra.mxu0 0.0
    %205 = vmatprep.subr.mxu0 0.0
    %206 = vmatpush1.msra.mxu0 0.0
    %207 = vmatprep.subr.mxu0 0.0
    %208 = vmatpush1.msra.mxu0 0.0
    %209 = vmatprep.subr.mxu0 0.0
    %210 = vmatpush1.msra.mxu0 0.0
    %211 = vmatprep.subr.mxu0 0.0
    %212 = vmatpush1.msra.mxu0 0.0
    %213 = vmatprep.subr.mxu0 0.0
    %214 = vmatpush1.msra.mxu0 0.0
    %215 = vmatprep.subr.mxu0 0.0
    %216 = vmatpush1.msra.mxu0 0.0
    %217 = vmatprep.subr.mxu0 0.0
    %218 = vmatpush1.msra.mxu0 0.0
    %219 = vmatprep.subr.mxu0 0.0
    %220 = vmatpush1.msra.mxu0 0.0
    %221 = vmatprep.subr.mxu0 0.0
    %222 = vmatpush1.msra.mxu0 0.0
    %223 = vmatprep.subr.mxu0 0.0
    %224 = vmatpush1.msra.mxu0 0.0
    %225 = vmatprep.subr.mxu0 0.0
    %226 = vmatpush1.msra.mxu0 0.0
    %227 = vmatprep.subr.mxu0 0.0
    %228 = vmatpush1.msra.mxu0 0.0
    %229 = vmatprep.subr.mxu0 0.0
    %230 = vmatpush1.msra.mxu0 0.0
    %231 = vmatprep.mubr.f32.mxu0 0.0
    %232 = vmatmul.mubr.f32.gmra.mrb[0].mxu0 %v157
    %v233 = vpop.f32.mrb[0].mxu0
    %v234 = vadd.f32 %v165, %v233
    %v235 = vpop.f32.mrb[0].mxu0
    %236 = vmatprep.mubr.f32.mxu0 0.0
    %237 = vmatmul.mubr.f32.gmra.mrb[0].mxu0 %v158
    %v238 = vpop.f32.mrb[0].mxu0
    %v239 = vadd.f32 %v165, %v238
    %v240 = vpop.f32.mrb[0].mxu0
    %241 = vdwg.mxu0
    %vm242 = vcmask 64512
    %v244 = vsel %vm242, %v159, 0
    %246 = vmatprep.subr.mxu0 0.0
    %247 = vmatpush1.msra.mxu0 %v234
    %248 = vmatprep.subr.mxu0 0.0
    %249 = vmatpush1.msra.mxu0 0.0
    %250 = vmatprep.subr.mxu0 0.0
    %251 = vmatpush1.msra.mxu0 0.0
    %252 = vmatprep.subr.mxu0 0.0
    %253 = vmatpush1.msra.mxu0 0.0
    %254 = vmatprep.subr.mxu0 0.0
    %255 = vmatpush1.msra.mxu0 0.0
    %256 = vmatprep.subr.mxu0 0.0
    %257 = vmatpush1.msra.mxu0 0.0
    %258 = vmatprep.subr.mxu0 0.0
    %259 = vmatpush1.msra.mxu0 0.0
    %260 = vmatprep.subr.mxu0 0.0
    %261 = vmatpush1.msra.mxu0 0.0
    %262 = vmatprep.subr.mxu0 0.0
    %263 = vmatpush1.msra.mxu0 0.0
    %264 = vmatprep.subr.mxu0 0.0
    %265 = vmatpush1.msra.mxu0 0.0
    %266 = vmatprep.subr.mxu0 0.0
    %267 = vmatpush1.msra.mxu0 0.0
    %268 = vmatprep.subr.mxu0 0.0
    %269 = vmatpush1.msra.mxu0 0.0
    %270 = vmatprep.subr.mxu0 0.0
    %271 = vmatpush1.msra.mxu0 0.0
    %272 = vmatprep.subr.mxu0 0.0
    %273 = vmatpush1.msra.mxu0 0.0
    %274 = vmatprep.subr.mxu0 0.0
    %275 = vmatpush1.msra.mxu0 0.0
    %276 = vmatprep.subr.mxu0 0.0
    %277 = vmatpush1.msra.mxu0 0.0
    %278 = vmatprep.subr.mxu0 0.0
    %279 = vmatpush1.msra.mxu0 0.0
    %280 = vmatprep.subr.mxu0 0.0
    %281 = vmatpush1.msra.mxu0 0.0
    %282 = vmatprep.subr.mxu0 0.0
    %283 = vmatpush1.msra.mxu0 0.0
    %284 = vmatprep.subr.mxu0 0.0
    %285 = vmatpush1.msra.mxu0 0.0
    %286 = vmatprep.subr.mxu0 0.0
    %287 = vmatpush1.msra.mxu0 0.0
    %288 = vmatprep.subr.mxu0 0.0
    %289 = vmatpush1.msra.mxu0 0.0
    %290 = vmatprep.subr.mxu0 0.0
    %291 = vmatpush1.msra.mxu0 0.0
    %292 = vmatprep.subr.mxu0 0.0
    %293 = vmatpush1.msra.mxu0 0.0
    %294 = vmatprep.subr.mxu0 0.0
    %295 = vmatpush1.msra.mxu0 0.0
    %296 = vmatprep.subr.mxu0 0.0
    %297 = vmatpush1.msra.mxu0 0.0
    %298 = vmatprep.subr.mxu0 0.0
    %299 = vmatpush1.msra.mxu0 0.0
    %300 = vmatprep.subr.mxu0 0.0
    %301 = vmatpush1.msra.mxu0 0.0
    %302 = vmatprep.subr.mxu0 0.0
    %303 = vmatpush1.msra.mxu0 0.0
    %304 = vmatprep.subr.mxu0 0.0
    %305 = vmatpush1.msra.mxu0 0.0
    %306 = vmatprep.subr.mxu0 0.0
    %307 = vmatpush1.msra.mxu0 0.0
    %308 = vmatprep.subr.mxu0 0.0
    %309 = vmatpush1.msra.mxu0 0.0
    %310 = vmatprep.mubr.f32.mxu0 0.0
    %311 = vmatmul.mubr.f32.gmra.mrb[0].mxu0 %v244
    %v312 = vpop.f32.mrb[0].mxu0
    %v313 = vadd.f32 0.0, %v312
    %v314 = vpop.f32.mrb[0].mxu0
    %315 = vdwg.mxu0
    %v317 = vsel %vm242, %v160, 0
    %319 = vmatprep.subr.mxu0 0.0
    %320 = vmatpush1.msra.mxu0 %v239
    %321 = vmatprep.subr.mxu0 0.0
    %322 = vmatpush1.msra.mxu0 0.0
    %323 = vmatprep.subr.mxu0 0.0
    %324 = vmatpush1.msra.mxu0 0.0
    %325 = vmatprep.subr.mxu0 0.0
    %326 = vmatpush1.msra.mxu0 0.0
    %327 = vmatprep.subr.mxu0 0.0
    %328 = vmatpush1.msra.mxu0 0.0
    %329 = vmatprep.subr.mxu0 0.0
    %330 = vmatpush1.msra.mxu0 0.0
    %331 = vmatprep.subr.mxu0 0.0
    %332 = vmatpush1.msra.mxu0 0.0
    %333 = vmatprep.subr.mxu0 0.0
    %334 = vmatpush1.msra.mxu0 0.0
    %335 = vmatprep.subr.mxu0 0.0
    %336 = vmatpush1.msra.mxu0 0.0
    %337 = vmatprep.subr.mxu0 0.0
    %338 = vmatpush1.msra.mxu0 0.0
    %339 = vmatprep.subr.mxu0 0.0
    %340 = vmatpush1.msra.mxu0 0.0
    %341 = vmatprep.subr.mxu0 0.0
    %342 = vmatpush1.msra.mxu0 0.0
    %343 = vmatprep.subr.mxu0 0.0
    %344 = vmatpush1.msra.mxu0 0.0
    %345 = vmatprep.subr.mxu0 0.0
    %346 = vmatpush1.msra.mxu0 0.0
    %347 = vmatprep.subr.mxu0 0.0
    %348 = vmatpush1.msra.mxu0 0.0
    %349 = vmatprep.subr.mxu0 0.0
    %350 = vmatpush1.msra.mxu0 0.0
    %351 = vmatprep.subr.mxu0 0.0
    %352 = vmatpush1.msra.mxu0 0.0
    %353 = vmatprep.subr.mxu0 0.0
    %354 = vmatpush1.msra.mxu0 0.0
    %355 = vmatprep.subr.mxu0 0.0
    %356 = vmatpush1.msra.mxu0 0.0
    %357 = vmatprep.subr.mxu0 0.0
    %358 = vmatpush1.msra.mxu0 0.0
    %359 = vmatprep.subr.mxu0 0.0
    %360 = vmatpush1.msra.mxu0 0.0
    %361 = vmatprep.subr.mxu0 0.0
    %362 = vmatpush1.msra.mxu0 0.0
    %363 = vmatprep.subr.mxu0 0.0
    %364 = vmatpush1.msra.mxu0 0.0
    %365 = vmatprep.subr.mxu0 0.0
    %366 = vmatpush1.msra.mxu0 0.0
    %367 = vmatprep.subr.mxu0 0.0
    %368 = vmatpush1.msra.mxu0 0.0
    %369 = vmatprep.subr.mxu0 0.0
    %370 = vmatpush1.msra.mxu0 0.0
    %371 = vmatprep.subr.mxu0 0.0
    %372 = vmatpush1.msra.mxu0 0.0
    %373 = vmatprep.subr.mxu0 0.0
    %374 = vmatpush1.msra.mxu0 0.0
    %375 = vmatprep.subr.mxu0 0.0
    %376 = vmatpush1.msra.mxu0 0.0
    %377 = vmatprep.subr.mxu0 0.0
    %378 = vmatpush1.msra.mxu0 0.0
    %379 = vmatprep.subr.mxu0 0.0
    %380 = vmatpush1.msra.mxu0 0.0
    %381 = vmatprep.subr.mxu0 0.0
    %382 = vmatpush1.msra.mxu0 0.0
    %383 = vmatprep.mubr.f32.mxu0 0.0
    %384 = vmatmul.mubr.f32.gmra.mrb[0].mxu0 %v317
    %v385 = vpop.f32.mrb[0].mxu0
    %v386 = vadd.f32 0.0, %v385
    %v387 = vpop.f32.mrb[0].mxu0
    %388 = vdwg.mxu0
    %v390 = vlaneseq
    %v391 = vshrl.u32 %v390, 7
    %v392 = vsub.s32 0, %v391
    %v393 = vrot.slane %v153, %v392
    %395 = vmatprep.subr.mxu0 0.0
    %396 = vmatpush1.msra.mxu0 %v120
    %397 = vmatprep.subr.mxu0 0.0
    %398 = vmatpush1.msra.mxu0 %v121
    %399 = vmatprep.subr.mxu0 0.0
    %400 = vmatpush1.msra.mxu0 %v122
    %401 = vmatprep.subr.mxu0 0.0
    %402 = vmatpush1.msra.mxu0 %v123
    %403 = vmatprep.subr.mxu0 0.0
    %404 = vmatpush1.msra.mxu0 %v124
    %405 = vmatprep.subr.mxu0 0.0
    %406 = vmatpush1.msra.mxu0 %v125
    %407 = vmatprep.subr.mxu0 0.0
    %408 = vmatpush1.msra.mxu0 %v126
    %409 = vmatprep.subr.mxu0 0.0
    %410 = vmatpush1.msra.mxu0 %v127
    %411 = vmatprep.subr.mxu0 0.0
    %412 = vmatpush1.msra.mxu0 %v128
    %413 = vmatprep.subr.mxu0 0.0
    %414 = vmatpush1.msra.mxu0 %v129
    %415 = vmatprep.subr.mxu0 0.0
    %416 = vmatpush1.msra.mxu0 %v130
    %417 = vmatprep.subr.mxu0 0.0
    %418 = vmatpush1.msra.mxu0 %v131
    %419 = vmatprep.subr.mxu0 0.0
    %420 = vmatpush1.msra.mxu0 %v132
    %421 = vmatprep.subr.mxu0 0.0
    %422 = vmatpush1.msra.mxu0 %v133
    %423 = vmatprep.subr.mxu0 0.0
    %424 = vmatpush1.msra.mxu0 %v134
    %425 = vmatprep.subr.mxu0 0.0
    %426 = vmatpush1.msra.mxu0 %v135
    %427 = vmatprep.subr.mxu0 0.0
    %428 = vmatpush1.msra.mxu0 0.0
    %429 = vmatprep.subr.mxu0 0.0
    %430 = vmatpush1.msra.mxu0 0.0
    %431 = vmatprep.subr.mxu0 0.0
    %432 = vmatpush1.msra.mxu0 0.0
    %433 = vmatprep.subr.mxu0 0.0
    %434 = vmatpush1.msra.mxu0 0.0
    %435 = vmatprep.subr.mxu0 0.0
    %436 = vmatpush1.msra.mxu0 0.0
    %437 = vmatprep.subr.mxu0 0.0
    %438 = vmatpush1.msra.mxu0 0.0
    %439 = vmatprep.subr.mxu0 0.0
    %440 = vmatpush1.msra.mxu0 0.0
    %441 = vmatprep.subr.mxu0 0.0
    %442 = vmatpush1.msra.mxu0 0.0
    %443 = vmatprep.subr.mxu0 0.0
    %444 = vmatpush1.msra.mxu0 0.0
    %445 = vmatprep.subr.mxu0 0.0
    %446 = vmatpush1.msra.mxu0 0.0
    %447 = vmatprep.subr.mxu0 0.0
    %448 = vmatpush1.msra.mxu0 0.0
    %449 = vmatprep.subr.mxu0 0.0
    %450 = vmatpush1.msra.mxu0 0.0
    %451 = vmatprep.subr.mxu0 0.0
    %452 = vmatpush1.msra.mxu0 0.0
    %453 = vmatprep.subr.mxu0 0.0
    %454 = vmatpush1.msra.mxu0 0.0
    %455 = vmatprep.subr.mxu0 0.0
    %456 = vmatpush1.msra.mxu0 0.0
    %457 = vmatprep.subr.mxu0 0.0
    %458 = vmatpush1.msra.mxu0 0.0
    %459 = vmatprep.mubr.f32.mxu0 0.0
    %460 = vmatmul.mubr.f32.gmra.mrb[0].mxu0 %v313
    %v461 = vpop.f32.mrb[0].mxu0
    %v462 = vadd.f32 %v393, %v461
    %v463 = vpop.f32.mrb[0].mxu0
    %464 = vmatprep.mubr.f32.mxu0 0.0
    %465 = vmatmul.mubr.f32.gmra.mrb[0].mxu0 %v386
    %v466 = vpop.f32.mrb[0].mxu0
    %v467 = vadd.f32 %v393, %v466
    %v468 = vpop.f32.mrb[0].mxu0
    %469 = vdwg.mxu0
    %v470 = vmax.f32 %v462, 0.0
    %v471 = vmax.f32 %v467, 0.0
    %v473 = vlaneseq
    %v474 = vshrl.u32 %v473, 7
    %v475 = vsub.s32 0, %v474
    %v476 = vrot.slane %v154, %v475
    %478 = vmatprep.subr.mxu0 0.0
    %479 = vmatpush1.msra.mxu0 %v136
    %480 = vmatprep.subr.mxu0 0.0
    %481 = vmatpush1.msra.mxu0 %v137
    %482 = vmatprep.subr.mxu0 0.0
    %483 = vmatpush1.msra.mxu0 %v138
    %484 = vmatprep.subr.mxu0 0.0
    %485 = vmatpush1.msra.mxu0 %v139
    %486 = vmatprep.subr.mxu0 0.0
    %487 = vmatpush1.msra.mxu0 %v140
    %488 = vmatprep.subr.mxu0 0.0
    %489 = vmatpush1.msra.mxu0 %v141
    %490 = vmatprep.subr.mxu0 0.0
    %491 = vmatpush1.msra.mxu0 %v142
    %492 = vmatprep.subr.mxu0 0.0
    %493 = vmatpush1.msra.mxu0 %v143
    %494 = vmatprep.subr.mxu0 0.0
    %495 = vmatpush1.msra.mxu0 %v144
    %496 = vmatprep.subr.mxu0 0.0
    %497 = vmatpush1.msra.mxu0 %v145
    %498 = vmatprep.subr.mxu0 0.0
    %499 = vmatpush1.msra.mxu0 %v146
    %500 = vmatprep.subr.mxu0 0.0
    %501 = vmatpush1.msra.mxu0 %v147
    %502 = vmatprep.subr.mxu0 0.0
    %503 = vmatpush1.msra.mxu0 %v148
    %504 = vmatprep.subr.mxu0 0.0
    %505 = vmatpush1.msra.mxu0 %v149
    %506 = vmatprep.subr.mxu0 0.0
    %507 = vmatpush1.msra.mxu0 %v150
    %508 = vmatprep.subr.mxu0 0.0
    %509 = vmatpush1.msra.mxu0 %v151
    %510 = vmatprep.subr.mxu0 0.0
    %511 = vmatpush1.msra.mxu0 0.0
    %512 = vmatprep.subr.mxu0 0.0
    %513 = vmatpush1.msra.mxu0 0.0
    %514 = vmatprep.subr.mxu0 0.0
    %515 = vmatpush1.msra.mxu0 0.0
    %516 = vmatprep.subr.mxu0 0.0
    %517 = vmatpush1.msra.mxu0 0.0
    %518 = vmatprep.subr.mxu0 0.0
    %519 = vmatpush1.msra.mxu0 0.0
    %520 = vmatprep.subr.mxu0 0.0
    %521 = vmatpush1.msra.mxu0 0.0
    %522 = vmatprep.subr.mxu0 0.0
    %523 = vmatpush1.msra.mxu0 0.0
    %524 = vmatprep.subr.mxu0 0.0
    %525 = vmatpush1.msra.mxu0 0.0
    %526 = vmatprep.subr.mxu0 0.0
    %527 = vmatpush1.msra.mxu0 0.0
    %528 = vmatprep.subr.mxu0 0.0
    %529 = vmatpush1.msra.mxu0 0.0
    %530 = vmatprep.subr.mxu0 0.0
    %531 = vmatpush1.msra.mxu0 0.0
    %532 = vmatprep.subr.mxu0 0.0
    %533 = vmatpush1.msra.mxu0 0.0
    %534 = vmatprep.subr.mxu0 0.0
    %535 = vmatpush1.msra.mxu0 0.0
    %536 = vmatprep.subr.mxu0 0.0
    %537 = vmatpush1.msra.mxu0 0.0
    %538 = vmatprep.subr.mxu0 0.0
    %539 = vmatpush1.msra.mxu0 0.0
    %540 = vmatprep.subr.mxu0 0.0
    %541 = vmatpush1.msra.mxu0 0.0
    %542 = vmatprep.mubr.f32.mxu0 0.0
    %543 = vmatmul.mubr.f32.gmra.mrb[0].mxu0 %v470
    %v544 = vpop.f32.mrb[0].mxu0
    %v545 = vadd.f32 %v476, %v544
    %v546 = vpop.f32.mrb[0].mxu0
    %547 = vmatprep.mubr.f32.mxu0 0.0
    %548 = vmatmul.mubr.f32.gmra.mrb[0].mxu0 %v471
    %v549 = vpop.f32.mrb[0].mxu0
    %v550 = vadd.f32 %v476, %v549
    %v551 = vpop.f32.mrb[0].mxu0
    %552 = vdwg.mxu0
    %v553 = vadd.f32 %v157, %v545
    %v554 = vadd.f32 %v158, %v550
    %555 = vadd.xlane.f32.xlu0 %v553
    %v556 = vpop.xlane.xlu0 %555
    %557 = vadd.xlane.f32.xlu0 %v554
    %v558 = vpop.xlane.xlu0 %557
    %v559 = vmul.f32 %v556, 0.03125
    %v560 = vmul.f32 %v558, 0.03125
    %v561 = vlaneseq
    %v562 = vand.u32 %v561, 127
    %vm563 = vcmp.lt.s32.totalorder %v562, 32
    %v564 = vsel %vm563, 1, 0
    %v565 = vcvt.s32.f32 %v564
    %v566 = vsub.f32 %v553, %v559
    %v567 = vsub.f32 %v554, %v560
    %v568 = vmul.f32 %v566, %v565
    %v569 = vmul.f32 %v567, %v565
    %v570 = vmul.f32 %v568, %v568
    %v571 = vmul.f32 %v569, %v569
    %572 = vadd.xlane.f32.xlu0 %v570
    %v573 = vpop.xlane.xlu0 %572
    %574 = vadd.xlane.f32.xlu0 %v571
    %v575 = vpop.xlane.xlu0 %574
    %v576 = vmul.f32 %v573, 0.03125
    %v577 = vmul.f32 %v575, 0.03125
    %v578 = vadd.f32 %v576, 1e-05
    %v579 = vadd.f32 %v577, 1e-05
    %v580 = vrsqrt.pop %v578
    %v581 = vrsqrt.pop %v579
    %v582 = vmul.f32 %v568, %v580
    %v583 = vmul.f32 %v569, %v581
    %v585 = vlaneseq
    %v586 = vshrl.u32 %v585, 7
    %v587 = vsub.s32 0, %v586
    %v588 = vrot.slane %v155, %v587
    %v590 = vmul.f32 %v582, %v588
    %v591 = vmul.f32 %v583, %v588
    %v593 = vlaneseq
    %v594 = vshrl.u32 %v593, 7
    %v595 = vsub.s32 0, %v594
    %v596 = vrot.slane %v156, %v595
    %v598 = vadd.f32 %v590, %v596
    %v599 = vadd.f32 %v591, %v596
    %600 = vst [vmem:[#allocation11] sm:$0xff] %v598
    %601 = vst [vmem:[#allocation11 + $0x8] sm:$0xff] %v599
    // Predicated region
    $region62: #{tpu_custom_call.1} parent=1 // pred_check
      _
    $region63: #{tpu_custom_call.1} parent=1 // pred_check_branch
      %603 = sbr.rel (0) target = $region65
    $region64: #{tpu_custom_call.1} parent=1 // pred_region
      %s605 = ssub.s32 256, 256
      %606 = vsyncadd [#allocation4], %s605
      %s607 = sshll.u32 [#allocation11], 4
      %s608 = int_to_ptr.vmem [resolvable:$true] %s607
      %613 = dma.vmem_to_hbm [thread:$0]  %s608, 256, %s10, [#allocation4], 128, 128, 8
    $region65: #{tpu_custom_call.1} parent=1 // pred_fallthru
      _
    // Predicated region
    $region66: #{tpu_custom_call.1} parent=1 // pred_check
      _
    $region67: #{tpu_custom_call.1} parent=1 // pred_check_branch
      %615 = sbr.rel (0) target = $region69
    $region68: #{tpu_custom_call.1} parent=1 // pred_region
      %616 = dma.done [#allocation4], 256
    $region69: #{tpu_custom_call.1} parent=1 // pred_fallthru
      _
    %617 = vsyncpa [#allocation3], 1
    %618 = vsyncpa [#allocation6], 1
    %619 = vsyncpa [#allocation9], 1
    %620 = vsyncpa [#allocation4], 1

</llo_original>
